<compile_context>
chip_gen: v7x
topology: tpu7x:2x2x1
jax: 0.10.0
libtpu: 0.0.40
codegen_flags: <defaults>
</compile_context>

<pallas_src>
import math

import jax
import jax.numpy as jnp
from jax.experimental import pallas as pl
from jax.experimental.pallas import tpu as pltpu  # noqa: F401  (imported per template)


# ----------------------------------------------------------------------------
# Fused GCN forward kernel: all layers in one kernel, activations VMEM-resident.
# ----------------------------------------------------------------------------
def _make_gcn_kernel(num_layers, act_name):
    if act_name not in ("relu", "tanh"):
        raise ValueError(f"unsupported act: {act_name}")

    def kernel(*refs):
        a_ref, x_ref = refs[0], refs[1]
        w_refs = refs[2:2 + num_layers]
        out_ref = refs[2 + num_layers]

        A = a_ref[...]                              # (N, N) = A + I (loaded once)
        deg = jnp.sum(A, axis=1, keepdims=True)     # (N, 1), >= 1 (self loops)
        dinv = jax.lax.rsqrt(deg)                   # D^{-1/2}

        h = x_ref[...]
        for li in range(num_layers):
            # GCNConv: linear transform, then normalized propagation.
            h = jnp.dot(h, w_refs[li][...], preferred_element_type=jnp.float32)
            # D^{-1/2} (A+I) D^{-1/2} h, applied as column/row scaling (no transpose).
            h = h * dinv
            h = jnp.dot(A, h, preferred_element_type=jnp.float32)
            h = h * dinv
            if li < num_layers - 1:
                if act_name == "relu":
                    h = jnp.maximum(h, 0.0)
                else:
                    h = jnp.tanh(h)
                # dropout: p = 0.0 in this config -> identity (no-op).
        out_ref[...] = h

    return kernel


def gcn_forward(x, edge_index, weights, *, act_name="relu"):
    """GCN_base.forward(x, edge_index) with the given per-layer weights."""
    n = x.shape[0]
    src, dst = edge_index[0], edge_index[1]
    # Dense adjacency A[dst, src] += 1, plus self loops (gcn_norm default).
    # Scatter-add over dynamic indices stays in plain JAX (built once per call).
    a_raw = (jnp.zeros((n, n), jnp.float32).at[dst, src].add(1.0)
             + jnp.eye(n, dtype=jnp.float32))

    out_dim = weights[-1].shape[1]
    kernel = _make_gcn_kernel(len(weights), act_name)
    return pl.pallas_call(
        kernel,
        out_shape=jax.ShapeDtypeStruct((n, out_dim), jnp.float32),
    )(a_raw, x, *weights)


# ----------------------------------------------------------------------------
# Parameter construction: GCNConv uses glorot-uniform weights, bias=False.
# PyG stores weight (out, in); we store the transposed (in, out) so the kernel
# computes x @ W directly.
# ----------------------------------------------------------------------------
def glorot_weight(key, fan_in, fan_out):
    bound = math.sqrt(6.0 / (fan_in + fan_out))
    return jax.random.uniform(key, (fan_in, fan_out), jnp.float32, -bound, bound)


def init_gcn_params(key, in_feats, n_hidden, n_layers):
    num_layers = n_layers + 1                      # GCN_base builds n_layers + 1 convs
    keys = jax.random.split(key, num_layers)
    dims = [in_feats] + [n_hidden] * num_layers
    return tuple(glorot_weight(keys[i], dims[i], dims[i + 1])
                 for i in range(num_layers))


# ----------------------------------------------------------------------------
# Pure-JAX reference (same math, no Pallas) for a correctness check.
# ----------------------------------------------------------------------------
def gcn_reference(x, edge_index, weights, *, act_name="relu"):
    n = x.shape[0]
    src, dst = edge_index[0], edge_index[1]
    A = jnp.zeros((n, n), jnp.float32).at[dst, src].add(1.0) + jnp.eye(n)
    deg = A.sum(axis=1)
    dinv = 1.0 / jnp.sqrt(deg)
    A_hat = dinv[:, None] * A * dinv[None, :]
    h = x
    num_layers = len(weights)
    for li, w in enumerate(weights):
        h = A_hat @ (h @ w)
        if li < num_layers - 1:
            h = jnp.maximum(h, 0.0) if act_name == "relu" else jnp.tanh(h)
    return h


if __name__ == "__main__":
    N = 128          # number of nodes
    IN_FEATS = 16
    N_HIDDEN = 32
    N_LAYERS = 2     # -> 3 GCNConv layers total

    key = jax.random.PRNGKey(0)
    k_par, k_x = jax.random.split(key, 2)

    weights = init_gcn_params(k_par, IN_FEATS, N_HIDDEN, N_LAYERS)
    x = jax.random.normal(k_x, (N, IN_FEATS), jnp.float32)

    # deterministic edge_index: bidirectional ring (no self loops), shape (2, 2N)
    idx = jnp.arange(N, dtype=jnp.int32)
    src = jnp.concatenate([idx, (idx + 1) % N])
    dst = jnp.concatenate([(idx + 1) % N, idx])
    edge_index = jnp.stack([src, dst], axis=0)

    out = jax.jit(gcn_forward)(x, edge_index, weights)
    out = jax.block_until_ready(out)

    assert out.shape == (N, N_HIDDEN)
    assert bool(jnp.all(jnp.isfinite(out)))

    ref = gcn_reference(x, edge_index, weights)
    assert bool(jnp.allclose(out, ref, rtol=2e-2, atol=2e-2)), (
        float(jnp.max(jnp.abs(out - ref))))

    print("KERNEL_OK")
</pallas_src>

<mosaic_0001>
module attributes {stable_mosaic.version = 11 : i64} {
  func.func private @main(%arg0: i32) attributes {dimension_semantics = [#tpu.dimension_semantics<core_parallel>], iteration_bounds = array<i64: 2>, tpu.core_type = #tpu.core_type<sc_scalar_subcore>, window_params = []} {
    return
  }
}

module attributes {stable_mosaic.version = 11 : i64} {
  func.func private @main(%arg0: i32) attributes {dimension_semantics = [#tpu.dimension_semantics<core_parallel>], iteration_bounds = array<i64: 2>, tpu.core_type = #tpu.core_type<sc_scalar_subcore>, window_params = []} {
    return
  }
}

module attributes {stable_mosaic.version = 11 : i64} {
  func.func @kernel(%arg0: memref<128x128xf32, #tpu.memory_space<vmem>>, %arg1: memref<128x16xf32, #tpu.memory_space<vmem>>, %arg2: memref<16x32xf32, #tpu.memory_space<vmem>>, %arg3: memref<32x32xf32, #tpu.memory_space<vmem>>, %arg4: memref<32x32xf32, #tpu.memory_space<vmem>>, %arg5: memref<128x32xf32, #tpu.memory_space<vmem>>) attributes {dimension_semantics = [], scalar_prefetch = 0 : i64, scratch_operands = 0 : i64, tpu.core_type = #tpu.core_type<tc>} {
    %c0 = arith.constant 0 : index
    %c0_0 = arith.constant 0 : index
    %0 = vector.load %arg0[%c0, %c0_0] : memref<128x128xf32, #tpu.memory_space<vmem>>, vector<128x128xf32>
    %cst = arith.constant dense<0.000000e+00> : vector<128xf32>
    %1 = vector.multi_reduction <add>, %0, %cst [1] : vector<128x128xf32> to vector<128xf32>
    %2 = vector.shape_cast %1 : vector<128xf32> to vector<128x1xf32>
    %3 = math.rsqrt %2 : vector<128x1xf32>
    %c0_1 = arith.constant 0 : index
    %c0_2 = arith.constant 0 : index
    %4 = vector.load %arg1[%c0_1, %c0_2] : memref<128x16xf32, #tpu.memory_space<vmem>>, vector<128x16xf32>
    %c0_3 = arith.constant 0 : index
    %c0_4 = arith.constant 0 : index
    %5 = vector.load %arg2[%c0_3, %c0_4] : memref<16x32xf32, #tpu.memory_space<vmem>>, vector<16x32xf32>
    %cst_5 = arith.constant dense<0.000000e+00> : vector<128x32xf32>
    %6 = tpu.matmul %4, %5, %cst_5 {dimension_numbers = #tpu.dot_dimension_numbers<[1], [0], [0], [1], [0, 0, 1, 1], [], []>} : vector<128x16xf32>, vector<16x32xf32>, vector<128x32xf32> -> vector<128x32xf32>
    %7 = vector.broadcast %3 : vector<128x1xf32> to vector<128x32xf32>
    %8 = arith.mulf %6, %7 : vector<128x32xf32>
    %cst_6 = arith.constant dense<0.000000e+00> : vector<128x32xf32>
    %9 = tpu.matmul %0, %8, %cst_6 {dimension_numbers = #tpu.dot_dimension_numbers<[1], [0], [0], [1], [0, 0, 1, 1], [], []>} : vector<128x128xf32>, vector<128x32xf32>, vector<128x32xf32> -> vector<128x32xf32>
    %10 = vector.broadcast %3 : vector<128x1xf32> to vector<128x32xf32>
    %11 = arith.mulf %9, %10 : vector<128x32xf32>
    %cst_7 = arith.constant 0.000000e+00 : f32
    %12 = vector.broadcast %cst_7 : f32 to vector<128x32xf32>
    %13 = arith.maximumf %11, %12 : vector<128x32xf32>
    %c0_8 = arith.constant 0 : index
    %c0_9 = arith.constant 0 : index
    %14 = vector.load %arg3[%c0_8, %c0_9] : memref<32x32xf32, #tpu.memory_space<vmem>>, vector<32x32xf32>
    %cst_10 = arith.constant dense<0.000000e+00> : vector<128x32xf32>
    %15 = tpu.matmul %13, %14, %cst_10 {dimension_numbers = #tpu.dot_dimension_numbers<[1], [0], [0], [1], [0, 0, 1, 1], [], []>} : vector<128x32xf32>, vector<32x32xf32>, vector<128x32xf32> -> vector<128x32xf32>
    %16 = vector.broadcast %3 : vector<128x1xf32> to vector<128x32xf32>
    %17 = arith.mulf %15, %16 : vector<128x32xf32>
    %cst_11 = arith.constant dense<0.000000e+00> : vector<128x32xf32>
    %18 = tpu.matmul %0, %17, %cst_11 {dimension_numbers = #tpu.dot_dimension_numbers<[1], [0], [0], [1], [0, 0, 1, 1], [], []>} : vector<128x128xf32>, vector<128x32xf32>, vector<128x32xf32> -> vector<128x32xf32>
    %19 = vector.broadcast %3 : vector<128x1xf32> to vector<128x32xf32>
    %20 = arith.mulf %18, %19 : vector<128x32xf32>
    %cst_12 = arith.constant 0.000000e+00 : f32
    %21 = vector.broadcast %cst_12 : f32 to vector<128x32xf32>
    %22 = arith.maximumf %20, %21 : vector<128x32xf32>
    %c0_13 = arith.constant 0 : index
    %c0_14 = arith.constant 0 : index
    %23 = vector.load %arg4[%c0_13, %c0_14] : memref<32x32xf32, #tpu.memory_space<vmem>>, vector<32x32xf32>
    %cst_15 = arith.constant dense<0.000000e+00> : vector<128x32xf32>
    %24 = tpu.matmul %22, %23, %cst_15 {dimension_numbers = #tpu.dot_dimension_numbers<[1], [0], [0], [1], [0, 0, 1, 1], [], []>} : vector<128x32xf32>, vector<32x32xf32>, vector<128x32xf32> -> vector<128x32xf32>
    %25 = vector.broadcast %3 : vector<128x1xf32> to vector<128x32xf32>
    %26 = arith.mulf %24, %25 : vector<128x32xf32>
    %cst_16 = arith.constant dense<0.000000e+00> : vector<128x32xf32>
    %27 = tpu.matmul %0, %26, %cst_16 {dimension_numbers = #tpu.dot_dimension_numbers<[1], [0], [0], [1], [0, 0, 1, 1], [], []>} : vector<128x128xf32>, vector<128x32xf32>, vector<128x32xf32> -> vector<128x32xf32>
    %28 = vector.broadcast %3 : vector<128x1xf32> to vector<128x32xf32>
    %29 = arith.mulf %27, %28 : vector<128x32xf32>
    %c0_17 = arith.constant 0 : index
    %c0_18 = arith.constant 0 : index
    %30 = vector.load %arg5[%c0_17, %c0_18] : memref<128x32xf32, #tpu.memory_space<vmem>>, vector<128x32xf32>
    tpu.vector_store %arg5[%c0_17, %c0_18], %29 {strides = array<i32>} : memref<128x32xf32, #tpu.memory_space<vmem>>, vector<128x32xf32>,
    return
  }
}

</mosaic_0001>

<llo_original>
// kernel: gcn_forward.1
$region0: #{gcn_forward.1}
  #allocation0 [shape = 'u32[]', space=smem, size = 0x4, offset = 0x4, fixed_abs, tag = 'smem constant byte address 0x4 - core index']
  #allocation1 [shape = 'u32[144,128]{1,0:T(1,128)}', space=vmem, size = 0x12000, scoped, tag = 'internal scratch']
  %s0 = inlined_call_operand.hbm [shape: f32[128,128], index: 0, kind: input, shape index: {}]
  %s1 = inlined_call_operand.vmem [shape: f32[128,16], index: 1, kind: input, shape index: {}]
  %s2 = inlined_call_operand.vmem [shape: f32[16,32], index: 2, kind: input, shape index: {}]
  %s3 = inlined_call_operand.vmem [shape: f32[32,32], index: 3, kind: input, shape index: {}]
  %s4 = inlined_call_operand.vmem [shape: f32[32,32], index: 4, kind: input, shape index: {}]
  %s5 = inlined_call_operand.vmem [shape: f32[128,32], index: 5, kind: output, shape index: {}]
  %s6 = sld [smem:[#allocation0]]
  $region34: #{gcn_forward.1} parent=0
    _
  %s8 = ssub.s32 1, %s6
  %s9 = scalar_select 0, %s8, %s6
  $region1: #{gcn_forward.1} parent=0
    #allocation2 [shape = 'u8[65536]{0}', space=vmem, size = 0x10000, scoped, tag = 'input window, operand 0, single buffered']
    #allocation3 [shape = 's32[1]{0}', space=sflag, size = 0x4, scoped, tag = 'scoped memory for gcn_forward.1']
    %10 = vsyncpa [#allocation3], 0
    // Predicated region
    $region2: #{gcn_forward.1} parent=1 // pred_check
      _
    $region3: #{gcn_forward.1} parent=1 // pred_check_branch
      %12 = sbr.rel (0) target = $region5
    $region4: #{gcn_forward.1} parent=1 // pred_region
      %s14 = ssub.s32 2048, 2048
      %15 = vsyncadd [#allocation3], %s14
      %s16 = sshll.u32 [#allocation2], 4
      %s17 = int_to_ptr.vmem [resolvable:$true] %s16
      %22 = dma.hbm_to_vmem [thread:$0]  %s0, 2048, %s17, [#allocation3], 128, 128, 8
    $region5: #{gcn_forward.1} parent=1 // pred_fallthru
      _
    // Predicated region
    $region6: #{gcn_forward.1} parent=1 // pred_check
      _
    $region7: #{gcn_forward.1} parent=1 // pred_check_branch
      %24 = sbr.rel (0) target = $region9
    $region8: #{gcn_forward.1} parent=1 // pred_region
      _
    $region9: #{gcn_forward.1} parent=1 // pred_fallthru
      _
    // Predicated region
    $region10: #{gcn_forward.1} parent=1 // pred_check
      _
    $region11: #{gcn_forward.1} parent=1 // pred_check_branch
      %26 = sbr.rel (0) target = $region13
    $region12: #{gcn_forward.1} parent=1 // pred_region
      _
    $region13: #{gcn_forward.1} parent=1 // pred_fallthru
      _
    // Predicated region
    $region14: #{gcn_forward.1} parent=1 // pred_check
      _
    $region15: #{gcn_forward.1} parent=1 // pred_check_branch
      %28 = sbr.rel (0) target = $region17
    $region16: #{gcn_forward.1} parent=1 // pred_region
      _
    $region17: #{gcn_forward.1} parent=1 // pred_fallthru
      _
    // Predicated region
    $region18: #{gcn_forward.1} parent=1 // pred_check
      _
    $region19: #{gcn_forward.1} parent=1 // pred_check_branch
      %30 = sbr.rel (0) target = $region21
    $region20: #{gcn_forward.1} parent=1 // pred_region
      _
    $region21: #{gcn_forward.1} parent=1 // pred_fallthru
      _
    // Predicated region
    $region22: #{gcn_forward.1} parent=1 // pred_check
      _
    $region23: #{gcn_forward.1} parent=1 // pred_check_branch
      %32 = sbr.rel (0) target = $region25
    $region24: #{gcn_forward.1} parent=1 // pred_region
      %33 = dma.done [#allocation3], 2048
    $region25: #{gcn_forward.1} parent=1 // pred_fallthru
      _
    %v34 = vld [vmem:[#allocation2] sm:$0xff]
    %v35 = vld [vmem:[#allocation2 + $0x8] sm:$0xff]
    %v36 = vld [vmem:[#allocation2 + $0x10] sm:$0xff]
    %v37 = vld [vmem:[#allocation2 + $0x18] sm:$0xff]
    %v38 = vld [vmem:[#allocation2 + $0x20] sm:$0xff]
    %v39 = vld [vmem:[#allocation2 + $0x28] sm:$0xff]
    %v40 = vld [vmem:[#allocation2 + $0x30] sm:$0xff]
    %v41 = vld [vmem:[#allocation2 + $0x38] sm:$0xff]
    %v42 = vld [vmem:[#allocation2 + $0x40] sm:$0xff]
    %v43 = vld [vmem:[#allocation2 + $0x48] sm:$0xff]
    %v44 = vld [vmem:[#allocation2 + $0x50] sm:$0xff]
    %v45 = vld [vmem:[#allocation2 + $0x58] sm:$0xff]
    %v46 = vld [vmem:[#allocation2 + $0x60] sm:$0xff]
    %v47 = vld [vmem:[#allocation2 + $0x68] sm:$0xff]
    %v48 = vld [vmem:[#allocation2 + $0x70] sm:$0xff]
    %v49 = vld [vmem:[#allocation2 + $0x78] sm:$0xff]
    %50 = vadd.xlane.f32.xlu0 %v34
    %v51 = vpop.xlane.xlu0 %50
    %52 = vadd.xlane.f32.xlu0 %v35
    %v53 = vpop.xlane.xlu0 %52
    %54 = vadd.xlane.f32.xlu0 %v36
    %v55 = vpop.xlane.xlu0 %54
    %56 = vadd.xlane.f32.xlu0 %v37
    %v57 = vpop.xlane.xlu0 %56
    %58 = vadd.xlane.f32.xlu0 %v38
    %v59 = vpop.xlane.xlu0 %58
    %60 = vadd.xlane.f32.xlu0 %v39
    %v61 = vpop.xlane.xlu0 %60
    %62 = vadd.xlane.f32.xlu0 %v40
    %v63 = vpop.xlane.xlu0 %62
    %64 = vadd.xlane.f32.xlu0 %v41
    %v65 = vpop.xlane.xlu0 %64
    %66 = vadd.xlane.f32.xlu0 %v42
    %v67 = vpop.xlane.xlu0 %66
    %68 = vadd.xlane.f32.xlu0 %v43
    %v69 = vpop.xlane.xlu0 %68
    %70 = vadd.xlane.f32.xlu0 %v44
    %v71 = vpop.xlane.xlu0 %70
    %72 = vadd.xlane.f32.xlu0 %v45
    %v73 = vpop.xlane.xlu0 %72
    %74 = vadd.xlane.f32.xlu0 %v46
    %v75 = vpop.xlane.xlu0 %74
    %76 = vadd.xlane.f32.xlu0 %v47
    %v77 = vpop.xlane.xlu0 %76
    %78 = vadd.xlane.f32.xlu0 %v48
    %v79 = vpop.xlane.xlu0 %78
    %80 = vadd.xlane.f32.xlu0 %v49
    %v81 = vpop.xlane.xlu0 %80
    %v82 = vrsqrt.pop %v51
    %v83 = vrsqrt.pop %v53
    %v84 = vrsqrt.pop %v55
    %v85 = vrsqrt.pop %v57
    %v86 = vrsqrt.pop %v59
    %v87 = vrsqrt.pop %v61
    %v88 = vrsqrt.pop %v63
    %v89 = vrsqrt.pop %v65
    %v90 = vrsqrt.pop %v67
    %v91 = vrsqrt.pop %v69
    %v92 = vrsqrt.pop %v71
    %v93 = vrsqrt.pop %v73
    %v94 = vrsqrt.pop %v75
    %v95 = vrsqrt.pop %v77
    %v96 = vrsqrt.pop %v79
    %v97 = vrsqrt.pop %v81
    %v98 = vld [vmem:[%s1] sm:$0xff]
    %v99 = vld [vmem:[%s1 + $0x8] sm:$0xff]
    %v100 = vld [vmem:[%s1 + $0x10] sm:$0xff]
    %v101 = vld [vmem:[%s1 + $0x18] sm:$0xff]
    %v102 = vld [vmem:[%s1 + $0x20] sm:$0xff]
    %v103 = vld [vmem:[%s1 + $0x28] sm:$0xff]
    %v104 = vld [vmem:[%s1 + $0x30] sm:$0xff]
    %v105 = vld [vmem:[%s1 + $0x38] sm:$0xff]
    %v106 = vld [vmem:[%s1 + $0x40] sm:$0xff]
    %v107 = vld [vmem:[%s1 + $0x48] sm:$0xff]
    %v108 = vld [vmem:[%s1 + $0x50] sm:$0xff]
    %v109 = vld [vmem:[%s1 + $0x58] sm:$0xff]
    %v110 = vld [vmem:[%s1 + $0x60] sm:$0xff]
    %v111 = vld [vmem:[%s1 + $0x68] sm:$0xff]
    %v112 = vld [vmem:[%s1 + $0x70] sm:$0xff]
    %v113 = vld [vmem:[%s1 + $0x78] sm:$0xff]
    %v114 = vld [vmem:[%s2] sm:$0xff]
    %v115 = vld [vmem:[%s2 + $0x8] sm:$0xff]
    %vm116 = vcmask 130048
    %v118 = vsel %vm116, %v98, 0
    %v121 = vsel %vm116, %v99, 0
    %v124 = vsel %vm116, %v100, 0
    %v127 = vsel %vm116, %v101, 0
    %v130 = vsel %vm116, %v102, 0
    %v133 = vsel %vm116, %v103, 0
    %v136 = vsel %vm116, %v104, 0
    %v139 = vsel %vm116, %v105, 0
    %v142 = vsel %vm116, %v106, 0
    %v145 = vsel %vm116, %v107, 0
    %v148 = vsel %vm116, %v108, 0
    %v151 = vsel %vm116, %v109, 0
    %v154 = vsel %vm116, %v110, 0
    %v157 = vsel %vm116, %v111, 0
    %v160 = vsel %vm116, %v112, 0
    %v163 = vsel %vm116, %v113, 0
    %165 = vmatprep.subr.mxu0 0.0
    %166 = vmatpush1.msra.mxu0 %v114
    %167 = vmatprep.subr.mxu0 0.0
    %168 = vmatpush1.msra.mxu0 %v115
    %169 = vmatprep.subr.mxu0 0.0
    %170 = vmatpush1.msra.mxu0 0.0
    %171 = vmatprep.subr.mxu0 0.0
    %172 = vmatpush1.msra.mxu0 0.0
    %173 = vmatprep.subr.mxu0 0.0
    %174 = vmatpush1.msra.mxu0 0.0
    %175 = vmatprep.subr.mxu0 0.0
    %176 = vmatpush1.msra.mxu0 0.0
    %177 = vmatprep.subr.mxu0 0.0
    %178 = vmatpush1.msra.mxu0 0.0
    %179 = vmatprep.subr.mxu0 0.0
    %180 = vmatpush1.msra.mxu0 0.0
    %181 = vmatprep.subr.mxu0 0.0
    %182 = vmatpush1.msra.mxu0 0.0
    %183 = vmatprep.subr.mxu0 0.0
    %184 = vmatpush1.msra.mxu0 0.0
    %185 = vmatprep.subr.mxu0 0.0
    %186 = vmatpush1.msra.mxu0 0.0
    %187 = vmatprep.subr.mxu0 0.0
    %188 = vmatpush1.msra.mxu0 0.0
    %189 = vmatprep.subr.mxu0 0.0
    %190 = vmatpush1.msra.mxu0 0.0
    %191 = vmatprep.subr.mxu0 0.0
    %192 = vmatpush1.msra.mxu0 0.0
    %193 = vmatprep.subr.mxu0 0.0
    %194 = vmatpush1.msra.mxu0 0.0
    %195 = vmatprep.subr.mxu0 0.0
    %196 = vmatpush1.msra.mxu0 0.0
    %197 = vmatprep.subr.mxu0 0.0
    %198 = vmatpush1.msra.mxu0 0.0
    %199 = vmatprep.subr.mxu0 0.0
    %200 = vmatpush1.msra.mxu0 0.0
    %201 = vmatprep.subr.mxu0 0.0
    %202 = vmatpush1.msra.mxu0 0.0
    %203 = vmatprep.subr.mxu0 0.0
    %204 = vmatpush1.msra.mxu0 0.0
    %205 = vmatprep.subr.mxu0 0.0
    %206 = vmatpush1.msra.mxu0 0.0
    %207 = vmatprep.subr.mxu0 0.0
    %208 = vmatpush1.msra.mxu0 0.0
    %209 = vmatprep.subr.mxu0 0.0
    %210 = vmatpush1.msra.mxu0 0.0
    %211 = vmatprep.subr.mxu0 0.0
    %212 = vmatpush1.msra.mxu0 0.0
    %213 = vmatprep.subr.mxu0 0.0
    %214 = vmatpush1.msra.mxu0 0.0
    %215 = vmatprep.subr.mxu0 0.0
    %216 = vmatpush1.msra.mxu0 0.0
    %217 = vmatprep.subr.mxu0 0.0
    %218 = vmatpush1.msra.mxu0 0.0
    %219 = vmatprep.subr.mxu0 0.0
    %220 = vmatpush1.msra.mxu0 0.0
    %221 = vmatprep.subr.mxu0 0.0
    %222 = vmatpush1.msra.mxu0 0.0
    %223 = vmatprep.subr.mxu0 0.0
    %224 = vmatpush1.msra.mxu0 0.0
    %225 = vmatprep.subr.mxu0 0.0
    %226 = vmatpush1.msra.mxu0 0.0
    %227 = vmatprep.subr.mxu0 0.0
    %228 = vmatpush1.msra.mxu0 0.0
    %229 = vmatprep.mubr.f32.mxu0 0.0
    %230 = vmatmul.mubr.f32.gmra.mrb[0].mxu0 %v118
    %v231 = vpop.f32.mrb[0].mxu0
    %v232 = vadd.f32 0.0, %v231
    %v233 = vpop.f32.mrb[0].mxu0
    %234 = vmatprep.mubr.f32.mxu0 0.0
    %235 = vmatmul.mubr.f32.gmra.mrb[0].mxu0 %v121
    %v236 = vpop.f32.mrb[0].mxu0
    %v237 = vadd.f32 0.0, %v236
    %v238 = vpop.f32.mrb[0].mxu0
    %239 = vmatprep.mubr.f32.mxu0 0.0
    %240 = vmatmul.mubr.f32.gmra.mrb[0].mxu0 %v124
    %v241 = vpop.f32.mrb[0].mxu0
    %v242 = vadd.f32 0.0, %v241
    %v243 = vpop.f32.mrb[0].mxu0
    %244 = vmatprep.mubr.f32.mxu0 0.0
    %245 = vmatmul.mubr.f32.gmra.mrb[0].mxu0 %v127
    %v246 = vpop.f32.mrb[0].mxu0
    %v247 = vadd.f32 0.0, %v246
    %v248 = vpop.f32.mrb[0].mxu0
    %249 = vmatprep.mubr.f32.mxu0 0.0
    %250 = vmatmul.mubr.f32.gmra.mrb[0].mxu0 %v130
    %v251 = vpop.f32.mrb[0].mxu0
    %v252 = vadd.f32 0.0, %v251
    %v253 = vpop.f32.mrb[0].mxu0
    %254 = vmatprep.mubr.f32.mxu0 0.0
    %255 = vmatmul.mubr.f32.gmra.mrb[0].mxu0 %v133
    %v256 = vpop.f32.mrb[0].mxu0
    %v257 = vadd.f32 0.0, %v256
    %v258 = vpop.f32.mrb[0].mxu0
    %259 = vmatprep.mubr.f32.mxu0 0.0
    %260 = vmatmul.mubr.f32.gmra.mrb[0].mxu0 %v136
    %v261 = vpop.f32.mrb[0].mxu0
    %v262 = vadd.f32 0.0, %v261
    %v263 = vpop.f32.mrb[0].mxu0
    %264 = vmatprep.mubr.f32.mxu0 0.0
    %265 = vmatmul.mubr.f32.gmra.mrb[0].mxu0 %v139
    %v266 = vpop.f32.mrb[0].mxu0
    %v267 = vadd.f32 0.0, %v266
    %v268 = vpop.f32.mrb[0].mxu0
    %269 = vmatprep.mubr.f32.mxu0 0.0
    %270 = vmatmul.mubr.f32.gmra.mrb[0].mxu0 %v142
    %v271 = vpop.f32.mrb[0].mxu0
    %v272 = vadd.f32 0.0, %v271
    %v273 = vpop.f32.mrb[0].mxu0
    %274 = vmatprep.mubr.f32.mxu0 0.0
    %275 = vmatmul.mubr.f32.gmra.mrb[0].mxu0 %v145
    %v276 = vpop.f32.mrb[0].mxu0
    %v277 = vadd.f32 0.0, %v276
    %v278 = vpop.f32.mrb[0].mxu0
    %279 = vmatprep.mubr.f32.mxu0 0.0
    %280 = vmatmul.mubr.f32.gmra.mrb[0].mxu0 %v148
    %v281 = vpop.f32.mrb[0].mxu0
    %v282 = vadd.f32 0.0, %v281
    %v283 = vpop.f32.mrb[0].mxu0
    %284 = vmatprep.mubr.f32.mxu0 0.0
    %285 = vmatmul.mubr.f32.gmra.mrb[0].mxu0 %v151
    %v286 = vpop.f32.mrb[0].mxu0
    %v287 = vadd.f32 0.0, %v286
    %v288 = vpop.f32.mrb[0].mxu0
    %289 = vmatprep.mubr.f32.mxu0 0.0
    %290 = vmatmul.mubr.f32.gmra.mrb[0].mxu0 %v154
    %v291 = vpop.f32.mrb[0].mxu0
    %v292 = vadd.f32 0.0, %v291
    %v293 = vpop.f32.mrb[0].mxu0
    %294 = vmatprep.mubr.f32.mxu0 0.0
    %295 = vmatmul.mubr.f32.gmra.mrb[0].mxu0 %v157
    %v296 = vpop.f32.mrb[0].mxu0
    %v297 = vadd.f32 0.0, %v296
    %v298 = vpop.f32.mrb[0].mxu0
    %299 = vmatprep.mubr.f32.mxu0 0.0
    %300 = vmatmul.mubr.f32.gmra.mrb[0].mxu0 %v160
    %v301 = vpop.f32.mrb[0].mxu0
    %v302 = vadd.f32 0.0, %v301
    %v303 = vpop.f32.mrb[0].mxu0
    %304 = vmatprep.mubr.f32.mxu0 0.0
    %305 = vmatmul.mubr.f32.gmra.mrb[0].mxu0 %v163
    %v306 = vpop.f32.mrb[0].mxu0
    %v307 = vadd.f32 0.0, %v306
    %v308 = vpop.f32.mrb[0].mxu0
    %309 = vdwg.mxu0
    %v310 = vmul.f32 %v232, %v82
    %v311 = vmul.f32 %v237, %v83
    %v312 = vmul.f32 %v242, %v84
    %v313 = vmul.f32 %v247, %v85
    %v314 = vmul.f32 %v252, %v86
    %v315 = vmul.f32 %v257, %v87
    %v316 = vmul.f32 %v262, %v88
    %v317 = vmul.f32 %v267, %v89
    %v318 = vmul.f32 %v272, %v90
    %v319 = vmul.f32 %v277, %v91
    %v320 = vmul.f32 %v282, %v92
    %v321 = vmul.f32 %v287, %v93
    %v322 = vmul.f32 %v292, %v94
    %v323 = vmul.f32 %v297, %v95
    %v324 = vmul.f32 %v302, %v96
    %v325 = vmul.f32 %v307, %v97
    %326 = vmatprep.subr.mxu0 0.0
    %327 = vmatpush1.msra.mxu0 %v310
    %328 = vmatprep.subr.mxu0 0.0
    %329 = vmatpush1.msra.mxu0 %v311
    %330 = vmatprep.subr.mxu0 0.0
    %331 = vmatpush1.msra.mxu0 %v312
    %332 = vmatprep.subr.mxu0 0.0
    %333 = vmatpush1.msra.mxu0 %v313
    %334 = vmatprep.subr.mxu0 0.0
    %335 = vmatpush1.msra.mxu0 %v314
    %336 = vmatprep.subr.mxu0 0.0
    %337 = vmatpush1.msra.mxu0 %v315
    %338 = vmatprep.subr.mxu0 0.0
    %339 = vmatpush1.msra.mxu0 %v316
    %340 = vmatprep.subr.mxu0 0.0
    %341 = vmatpush1.msra.mxu0 %v317
    %342 = vmatprep.subr.mxu0 0.0
    %343 = vmatpush1.msra.mxu0 %v318
    %344 = vmatprep.subr.mxu0 0.0
    %345 = vmatpush1.msra.mxu0 %v319
    %346 = vmatprep.subr.mxu0 0.0
    %347 = vmatpush1.msra.mxu0 %v320
    %348 = vmatprep.subr.mxu0 0.0
    %349 = vmatpush1.msra.mxu0 %v321
    %350 = vmatprep.subr.mxu0 0.0
    %351 = vmatpush1.msra.mxu0 %v322
    %352 = vmatprep.subr.mxu0 0.0
    %353 = vmatpush1.msra.mxu0 %v323
    %354 = vmatprep.subr.mxu0 0.0
    %355 = vmatpush1.msra.mxu0 %v324
    %356 = vmatprep.subr.mxu0 0.0
    %357 = vmatpush1.msra.mxu0 %v325
    %358 = vmatprep.subr.mxu0 0.0
    %359 = vmatpush1.msra.mxu0 0.0
    %360 = vmatprep.subr.mxu0 0.0
    %361 = vmatpush1.msra.mxu0 0.0
    %362 = vmatprep.subr.mxu0 0.0
    %363 = vmatpush1.msra.mxu0 0.0
    %364 = vmatprep.subr.mxu0 0.0
    %365 = vmatpush1.msra.mxu0 0.0
    %366 = vmatprep.subr.mxu0 0.0
    %367 = vmatpush1.msra.mxu0 0.0
    %368 = vmatprep.subr.mxu0 0.0
    %369 = vmatpush1.msra.mxu0 0.0
    %370 = vmatprep.subr.mxu0 0.0
    %371 = vmatpush1.msra.mxu0 0.0
    %372 = vmatprep.subr.mxu0 0.0
    %373 = vmatpush1.msra.mxu0 0.0
    %374 = vmatprep.subr.mxu0 0.0
    %375 = vmatpush1.msra.mxu0 0.0
    %376 = vmatprep.subr.mxu0 0.0
    %377 = vmatpush1.msra.mxu0 0.0
    %378 = vmatprep.subr.mxu0 0.0
    %379 = vmatpush1.msra.mxu0 0.0
    %380 = vmatprep.subr.mxu0 0.0
    %381 = vmatpush1.msra.mxu0 0.0
    %382 = vmatprep.subr.mxu0 0.0
    %383 = vmatpush1.msra.mxu0 0.0
    %384 = vmatprep.subr.mxu0 0.0
    %385 = vmatpush1.msra.mxu0 0.0
    %386 = vmatprep.subr.mxu0 0.0
    %387 = vmatpush1.msra.mxu0 0.0
    %388 = vmatprep.subr.mxu0 0.0
    %389 = vmatpush1.msra.mxu0 0.0
    %390 = vmatprep.mubr.f32.mxu0 0.0
    %391 = vmatmul.mubr.f32.gmra.mrb[0].mxu0 %v34
    %v392 = vpop.f32.mrb[0].mxu0
    %v393 = vadd.f32 0.0, %v392
    %v394 = vpop.f32.mrb[0].mxu0
    %395 = vmatprep.mubr.f32.mxu0 0.0
    %396 = vmatmul.mubr.f32.gmra.mrb[0].mxu0 %v35
    %v397 = vpop.f32.mrb[0].mxu0
    %v398 = vadd.f32 0.0, %v397
    %v399 = vpop.f32.mrb[0].mxu0
    %400 = vmatprep.mubr.f32.mxu0 0.0
    %401 = vmatmul.mubr.f32.gmra.mrb[0].mxu0 %v36
    %v402 = vpop.f32.mrb[0].mxu0
    %v403 = vadd.f32 0.0, %v402
    %v404 = vpop.f32.mrb[0].mxu0
    %405 = vmatprep.mubr.f32.mxu0 0.0
    %406 = vmatmul.mubr.f32.gmra.mrb[0].mxu0 %v37
    %v407 = vpop.f32.mrb[0].mxu0
    %v408 = vadd.f32 0.0, %v407
    %v409 = vpop.f32.mrb[0].mxu0
    %410 = vmatprep.mubr.f32.mxu0 0.0
    %411 = vmatmul.mubr.f32.gmra.mrb[0].mxu0 %v38
    %v412 = vpop.f32.mrb[0].mxu0
    %v413 = vadd.f32 0.0, %v412
    %v414 = vpop.f32.mrb[0].mxu0
    %415 = vmatprep.mubr.f32.mxu0 0.0
    %416 = vmatmul.mubr.f32.gmra.mrb[0].mxu0 %v39
    %v417 = vpop.f32.mrb[0].mxu0
    %v418 = vadd.f32 0.0, %v417
    %v419 = vpop.f32.mrb[0].mxu0
    %420 = vmatprep.mubr.f32.mxu0 0.0
    %421 = vmatmul.mubr.f32.gmra.mrb[0].mxu0 %v40
    %v422 = vpop.f32.mrb[0].mxu0
    %v423 = vadd.f32 0.0, %v422
    %v424 = vpop.f32.mrb[0].mxu0
    %425 = vmatprep.mubr.f32.mxu0 0.0
    %426 = vmatmul.mubr.f32.gmra.mrb[0].mxu0 %v41
    %v427 = vpop.f32.mrb[0].mxu0
    %v428 = vadd.f32 0.0, %v427
    %v429 = vpop.f32.mrb[0].mxu0
    %430 = vmatprep.mubr.f32.mxu0 0.0
    %431 = vmatmul.mubr.f32.gmra.mrb[0].mxu0 %v42
    %v432 = vpop.f32.mrb[0].mxu0
    %v433 = vadd.f32 0.0, %v432
    %v434 = vpop.f32.mrb[0].mxu0
    %435 = vmatprep.mubr.f32.mxu0 0.0
    %436 = vmatmul.mubr.f32.gmra.mrb[0].mxu0 %v43
    %v437 = vpop.f32.mrb[0].mxu0
    %v438 = vadd.f32 0.0, %v437
    %v439 = vpop.f32.mrb[0].mxu0
    %440 = vmatprep.mubr.f32.mxu0 0.0
    %441 = vmatmul.mubr.f32.gmra.mrb[0].mxu0 %v44
    %v442 = vpop.f32.mrb[0].mxu0
    %v443 = vadd.f32 0.0, %v442
    %v444 = vpop.f32.mrb[0].mxu0
    %445 = vmatprep.mubr.f32.mxu0 0.0
    %446 = vmatmul.mubr.f32.gmra.mrb[0].mxu0 %v45
    %v447 = vpop.f32.mrb[0].mxu0
    %v448 = vadd.f32 0.0, %v447
    %v449 = vpop.f32.mrb[0].mxu0
    %450 = vmatprep.mubr.f32.mxu0 0.0
    %451 = vmatmul.mubr.f32.gmra.mrb[0].mxu0 %v46
    %v452 = vpop.f32.mrb[0].mxu0
    %v453 = vadd.f32 0.0, %v452
    %v454 = vpop.f32.mrb[0].mxu0
    %455 = vmatprep.mubr.f32.mxu0 0.0
    %456 = vmatmul.mubr.f32.gmra.mrb[0].mxu0 %v47
    %v457 = vpop.f32.mrb[0].mxu0
    %v458 = vadd.f32 0.0, %v457
    %v459 = vpop.f32.mrb[0].mxu0
    %460 = vmatprep.mubr.f32.mxu0 0.0
    %461 = vmatmul.mubr.f32.gmra.mrb[0].mxu0 %v48
    %v462 = vpop.f32.mrb[0].mxu0
    %v463 = vadd.f32 0.0, %v462
    %v464 = vpop.f32.mrb[0].mxu0
    %465 = vmatprep.mubr.f32.mxu0 0.0
    %466 = vmatmul.mubr.f32.gmra.mrb[0].mxu0 %v49
    %v467 = vpop.f32.mrb[0].mxu0
    %v468 = vadd.f32 0.0, %v467
    %v469 = vpop.f32.mrb[0].mxu0
    %470 = vdwg.mxu0
    %v471 = vmul.f32 %v393, %v82
    %v472 = vmul.f32 %v398, %v83
    %v473 = vmul.f32 %v403, %v84
    %v474 = vmul.f32 %v408, %v85
    %v475 = vmul.f32 %v413, %v86
    %v476 = vmul.f32 %v418, %v87
    %v477 = vmul.f32 %v423, %v88
    %v478 = vmul.f32 %v428, %v89
    %v479 = vmul.f32 %v433, %v90
    %v480 = vmul.f32 %v438, %v91
    %v481 = vmul.f32 %v443, %v92
    %v482 = vmul.f32 %v448, %v93
    %v483 = vmul.f32 %v453, %v94
    %v484 = vmul.f32 %v458, %v95
    %v485 = vmul.f32 %v463, %v96
    %v486 = vmul.f32 %v468, %v97
    %v487 = vmax.f32 %v471, 0.0
    %v488 = vmax.f32 %v472, 0.0
    %v489 = vmax.f32 %v473, 0.0
    %v490 = vmax.f32 %v474, 0.0
    %v491 = vmax.f32 %v475, 0.0
    %v492 = vmax.f32 %v476, 0.0
    %v493 = vmax.f32 %v477, 0.0
    %v494 = vmax.f32 %v478, 0.0
    %v495 = vmax.f32 %v479, 0.0
    %v496 = vmax.f32 %v480, 0.0
    %v497 = vmax.f32 %v481, 0.0
    %v498 = vmax.f32 %v482, 0.0
    %v499 = vmax.f32 %v483, 0.0
    %v500 = vmax.f32 %v484, 0.0
    %v501 = vmax.f32 %v485, 0.0
    %v502 = vmax.f32 %v486, 0.0
    %v503 = vld [vmem:[%s3] sm:$0xff]
    %v504 = vld [vmem:[%s3 + $0x8] sm:$0xff]
    %v505 = vld [vmem:[%s3 + $0x10] sm:$0xff]
    %v506 = vld [vmem:[%s3 + $0x18] sm:$0xff]
    %vm507 = vcmask 261120
    %v509 = vsel %vm507, %v487, 0
    %v512 = vsel %vm507, %v488, 0
    %v515 = vsel %vm507, %v489, 0
    %v518 = vsel %vm507, %v490, 0
    %v521 = vsel %vm507, %v491, 0
    %v524 = vsel %vm507, %v492, 0
    %v527 = vsel %vm507, %v493, 0
    %v530 = vsel %vm507, %v494, 0
    %v533 = vsel %vm507, %v495, 0
    %v536 = vsel %vm507, %v496, 0
    %v539 = vsel %vm507, %v497, 0
    %v542 = vsel %vm507, %v498, 0
    %v545 = vsel %vm507, %v499, 0
    %v548 = vsel %vm507, %v500, 0
    %v551 = vsel %vm507, %v501, 0
    %v554 = vsel %vm507, %v502, 0
    %556 = vmatprep.subr.mxu0 0.0
    %557 = vmatpush1.msra.mxu0 %v503
    %558 = vmatprep.subr.mxu0 0.0
    %559 = vmatpush1.msra.mxu0 %v504
    %560 = vmatprep.subr.mxu0 0.0
    %561 = vmatpush1.msra.mxu0 %v505
    %562 = vmatprep.subr.mxu0 0.0
    %563 = vmatpush1.msra.mxu0 %v506
    %564 = vmatprep.subr.mxu0 0.0
    %565 = vmatpush1.msra.mxu0 0.0
    %566 = vmatprep.subr.mxu0 0.0
    %567 = vmatpush1.msra.mxu0 0.0
    %568 = vmatprep.subr.mxu0 0.0
    %569 = vmatpush1.msra.mxu0 0.0
    %570 = vmatprep.subr.mxu0 0.0
    %571 = vmatpush1.msra.mxu0 0.0
    %572 = vmatprep.subr.mxu0 0.0
    %573 = vmatpush1.msra.mxu0 0.0
    %574 = vmatprep.subr.mxu0 0.0
    %575 = vmatpush1.msra.mxu0 0.0
    %576 = vmatprep.subr.mxu0 0.0
    %577 = vmatpush1.msra.mxu0 0.0
    %578 = vmatprep.subr.mxu0 0.0
    %579 = vmatpush1.msra.mxu0 0.0
    %580 = vmatprep.subr.mxu0 0.0
    %581 = vmatpush1.msra.mxu0 0.0
    %582 = vmatprep.subr.mxu0 0.0
    %583 = vmatpush1.msra.mxu0 0.0
    %584 = vmatprep.subr.mxu0 0.0
    %585 = vmatpush1.msra.mxu0 0.0
    %586 = vmatprep.subr.mxu0 0.0
    %587 = vmatpush1.msra.mxu0 0.0
    %588 = vmatprep.subr.mxu0 0.0
    %589 = vmatpush1.msra.mxu0 0.0
    %590 = vmatprep.subr.mxu0 0.0
    %591 = vmatpush1.msra.mxu0 0.0
    %592 = vmatprep.subr.mxu0 0.0
    %593 = vmatpush1.msra.mxu0 0.0
    %594 = vmatprep.subr.mxu0 0.0
    %595 = vmatpush1.msra.mxu0 0.0
    %596 = vmatprep.subr.mxu0 0.0
    %597 = vmatpush1.msra.mxu0 0.0
    %598 = vmatprep.subr.mxu0 0.0
    %599 = vmatpush1.msra.mxu0 0.0
    %600 = vmatprep.subr.mxu0 0.0
    %601 = vmatpush1.msra.mxu0 0.0
    %602 = vmatprep.subr.mxu0 0.0
    %603 = vmatpush1.msra.mxu0 0.0
    %604 = vmatprep.subr.mxu0 0.0
    %605 = vmatpush1.msra.mxu0 0.0
    %606 = vmatprep.subr.mxu0 0.0
    %607 = vmatpush1.msra.mxu0 0.0
    %608 = vmatprep.subr.mxu0 0.0
    %609 = vmatpush1.msra.mxu0 0.0
    %610 = vmatprep.subr.mxu0 0.0
    %611 = vmatpush1.msra.mxu0 0.0
    %612 = vmatprep.subr.mxu0 0.0
    %613 = vmatpush1.msra.mxu0 0.0
    %614 = vmatprep.subr.mxu0 0.0
    %615 = vmatpush1.msra.mxu0 0.0
    %616 = vmatprep.subr.mxu0 0.0
    %617 = vmatpush1.msra.mxu0 0.0
    %618 = vmatprep.subr.mxu0 0.0
    %619 = vmatpush1.msra.mxu0 0.0
    %620 = vmatprep.mubr.f32.mxu0 0.0
    %621 = vmatmul.mubr.f32.gmra.mrb[0].mxu0 %v509
    %v622 = vpop.f32.mrb[0].mxu0
    %v623 = vadd.f32 0.0, %v622
    %v624 = vpop.f32.mrb[0].mxu0
    %625 = vmatprep.mubr.f32.mxu0 0.0
    %626 = vmatmul.mubr.f32.gmra.mrb[0].mxu0 %v512
    %v627 = vpop.f32.mrb[0].mxu0
    %v628 = vadd.f32 0.0, %v627
    %v629 = vpop.f32.mrb[0].mxu0
    %630 = vmatprep.mubr.f32.mxu0 0.0
    %631 = vmatmul.mubr.f32.gmra.mrb[0].mxu0 %v515
    %v632 = vpop.f32.mrb[0].mxu0
    %v633 = vadd.f32 0.0, %v632
    %v634 = vpop.f32.mrb[0].mxu0
    %635 = vmatprep.mubr.f32.mxu0 0.0
    %636 = vmatmul.mubr.f32.gmra.mrb[0].mxu0 %v518
    %v637 = vpop.f32.mrb[0].mxu0
    %v638 = vadd.f32 0.0, %v637
    %v639 = vpop.f32.mrb[0].mxu0
    %640 = vmatprep.mubr.f32.mxu0 0.0
    %641 = vmatmul.mubr.f32.gmra.mrb[0].mxu0 %v521
    %v642 = vpop.f32.mrb[0].mxu0
    %v643 = vadd.f32 0.0, %v642
    %v644 = vpop.f32.mrb[0].mxu0
    %645 = vmatprep.mubr.f32.mxu0 0.0
    %646 = vmatmul.mubr.f32.gmra.mrb[0].mxu0 %v524
    %v647 = vpop.f32.mrb[0].mxu0
    %v648 = vadd.f32 0.0, %v647
    %v649 = vpop.f32.mrb[0].mxu0
    %650 = vmatprep.mubr.f32.mxu0 0.0
    %651 = vmatmul.mubr.f32.gmra.mrb[0].mxu0 %v527
    %v652 = vpop.f32.mrb[0].mxu0
    %v653 = vadd.f32 0.0, %v652
    %v654 = vpop.f32.mrb[0].mxu0
    %655 = vmatprep.mubr.f32.mxu0 0.0
    %656 = vmatmul.mubr.f32.gmra.mrb[0].mxu0 %v530
    %v657 = vpop.f32.mrb[0].mxu0
    %v658 = vadd.f32 0.0, %v657
    %v659 = vpop.f32.mrb[0].mxu0
    %660 = vmatprep.mubr.f32.mxu0 0.0
    %661 = vmatmul.mubr.f32.gmra.mrb[0].mxu0 %v533
    %v662 = vpop.f32.mrb[0].mxu0
    %v663 = vadd.f32 0.0, %v662
    %v664 = vpop.f32.mrb[0].mxu0
    %665 = vmatprep.mubr.f32.mxu0 0.0
    %666 = vmatmul.mubr.f32.gmra.mrb[0].mxu0 %v536
    %v667 = vpop.f32.mrb[0].mxu0
    %v668 = vadd.f32 0.0, %v667
    %v669 = vpop.f32.mrb[0].mxu0
    %670 = vmatprep.mubr.f32.mxu0 0.0
    %671 = vmatmul.mubr.f32.gmra.mrb[0].mxu0 %v539
    %v672 = vpop.f32.mrb[0].mxu0
    %v673 = vadd.f32 0.0, %v672
    %v674 = vpop.f32.mrb[0].mxu0
    %675 = vmatprep.mubr.f32.mxu0 0.0
    %676 = vmatmul.mubr.f32.gmra.mrb[0].mxu0 %v542
    %v677 = vpop.f32.mrb[0].mxu0
    %v678 = vadd.f32 0.0, %v677
    %v679 = vpop.f32.mrb[0].mxu0
    %680 = vmatprep.mubr.f32.mxu0 0.0
    %681 = vmatmul.mubr.f32.gmra.mrb[0].mxu0 %v545
    %v682 = vpop.f32.mrb[0].mxu0
    %v683 = vadd.f32 0.0, %v682
    %v684 = vpop.f32.mrb[0].mxu0
    %685 = vmatprep.mubr.f32.mxu0 0.0
    %686 = vmatmul.mubr.f32.gmra.mrb[0].mxu0 %v548
    %v687 = vpop.f32.mrb[0].mxu0
    %v688 = vadd.f32 0.0, %v687
    %v689 = vpop.f32.mrb[0].mxu0
    %690 = vmatprep.mubr.f32.mxu0 0.0
    %691 = vmatmul.mubr.f32.gmra.mrb[0].mxu0 %v551
    %v692 = vpop.f32.mrb[0].mxu0
    %v693 = vadd.f32 0.0, %v692
    %v694 = vpop.f32.mrb[0].mxu0
    %695 = vmatprep.mubr.f32.mxu0 0.0
    %696 = vmatmul.mubr.f32.gmra.mrb[0].mxu0 %v554
    %v697 = vpop.f32.mrb[0].mxu0
    %v698 = vadd.f32 0.0, %v697
    %v699 = vpop.f32.mrb[0].mxu0
    %700 = vdwg.mxu0
    %v701 = vmul.f32 %v623, %v82
    %v702 = vmul.f32 %v628, %v83
    %v703 = vmul.f32 %v633, %v84
    %v704 = vmul.f32 %v638, %v85
    %v705 = vmul.f32 %v643, %v86
    %v706 = vmul.f32 %v648, %v87
    %v707 = vmul.f32 %v653, %v88
    %v708 = vmul.f32 %v658, %v89
    %v709 = vmul.f32 %v663, %v90
    %v710 = vmul.f32 %v668, %v91
    %v711 = vmul.f32 %v673, %v92
    %v712 = vmul.f32 %v678, %v93
    %v713 = vmul.f32 %v683, %v94
    %v714 = vmul.f32 %v688, %v95
    %v715 = vmul.f32 %v693, %v96
    %v716 = vmul.f32 %v698, %v97
    %717 = vmatprep.subr.mxu0 0.0
    %718 = vmatpush1.msra.mxu0 %v701
    %719 = vmatprep.subr.mxu0 0.0
    %720 = vmatpush1.msra.mxu0 %v702
    %721 = vmatprep.subr.mxu0 0.0
    %722 = vmatpush1.msra.mxu0 %v703
    %723 = vmatprep.subr.mxu0 0.0
    %724 = vmatpush1.msra.mxu0 %v704
    %725 = vmatprep.subr.mxu0 0.0
    %726 = vmatpush1.msra.mxu0 %v705
    %727 = vmatprep.subr.mxu0 0.0
    %728 = vmatpush1.msra.mxu0 %v706
    %729 = vmatprep.subr.mxu0 0.0
    %730 = vmatpush1.msra.mxu0 %v707
    %731 = vmatprep.subr.mxu0 0.0
    %732 = vmatpush1.msra.mxu0 %v708
    %733 = vmatprep.subr.mxu0 0.0
    %734 = vmatpush1.msra.mxu0 %v709
    %735 = vmatprep.subr.mxu0 0.0
    %736 = vmatpush1.msra.mxu0 %v710
    %737 = vmatprep.subr.mxu0 0.0
    %738 = vmatpush1.msra.mxu0 %v711
    %739 = vmatprep.subr.mxu0 0.0
    %740 = vmatpush1.msra.mxu0 %v712
    %741 = vmatprep.subr.mxu0 0.0
    %742 = vmatpush1.msra.mxu0 %v713
    %743 = vmatprep.subr.mxu0 0.0
    %744 = vmatpush1.msra.mxu0 %v714
    %745 = vmatprep.subr.mxu0 0.0
    %746 = vmatpush1.msra.mxu0 %v715
    %747 = vmatprep.subr.mxu0 0.0
    %748 = vmatpush1.msra.mxu0 %v716
    %749 = vmatprep.subr.mxu0 0.0
    %750 = vmatpush1.msra.mxu0 0.0
    %751 = vmatprep.subr.mxu0 0.0
    %752 = vmatpush1.msra.mxu0 0.0
    %753 = vmatprep.subr.mxu0 0.0
    %754 = vmatpush1.msra.mxu0 0.0
    %755 = vmatprep.subr.mxu0 0.0
    %756 = vmatpush1.msra.mxu0 0.0
    %757 = vmatprep.subr.mxu0 0.0
    %758 = vmatpush1.msra.mxu0 0.0
    %759 = vmatprep.subr.mxu0 0.0
    %760 = vmatpush1.msra.mxu0 0.0
    %761 = vmatprep.subr.mxu0 0.0
    %762 = vmatpush1.msra.mxu0 0.0
    %763 = vmatprep.subr.mxu0 0.0
    %764 = vmatpush1.msra.mxu0 0.0
    %765 = vmatprep.subr.mxu0 0.0
    %766 = vmatpush1.msra.mxu0 0.0
    %767 = vmatprep.subr.mxu0 0.0
    %768 = vmatpush1.msra.mxu0 0.0
    %769 = vmatprep.subr.mxu0 0.0
    %770 = vmatpush1.msra.mxu0 0.0
    %771 = vmatprep.subr.mxu0 0.0
    %772 = vmatpush1.msra.mxu0 0.0
    %773 = vmatprep.subr.mxu0 0.0
    %774 = vmatpush1.msra.mxu0 0.0
    %775 = vmatprep.subr.mxu0 0.0
    %776 = vmatpush1.msra.mxu0 0.0
    %777 = vmatprep.subr.mxu0 0.0
    %778 = vmatpush1.msra.mxu0 0.0
    %779 = vmatprep.subr.mxu0 0.0
    %780 = vmatpush1.msra.mxu0 0.0
    %781 = vmatprep.mubr.f32.mxu0 0.0
    %782 = vmatmul.mubr.f32.gmra.mrb[0].mxu0 %v34
    %v783 = vpop.f32.mrb[0].mxu0
    %v784 = vadd.f32 0.0, %v783
    %v785 = vpop.f32.mrb[0].mxu0
    %786 = vmatprep.mubr.f32.mxu0 0.0
    %787 = vmatmul.mubr.f32.gmra.mrb[0].mxu0 %v35
    %v788 = vpop.f32.mrb[0].mxu0
    %v789 = vadd.f32 0.0, %v788
    %v790 = vpop.f32.mrb[0].mxu0
    %791 = vmatprep.mubr.f32.mxu0 0.0
    %792 = vmatmul.mubr.f32.gmra.mrb[0].mxu0 %v36
    %v793 = vpop.f32.mrb[0].mxu0
    %v794 = vadd.f32 0.0, %v793
    %v795 = vpop.f32.mrb[0].mxu0
    %796 = vmatprep.mubr.f32.mxu0 0.0
    %797 = vmatmul.mubr.f32.gmra.mrb[0].mxu0 %v37
    %v798 = vpop.f32.mrb[0].mxu0
    %v799 = vadd.f32 0.0, %v798
    %v800 = vpop.f32.mrb[0].mxu0
    %801 = vmatprep.mubr.f32.mxu0 0.0
    %802 = vmatmul.mubr.f32.gmra.mrb[0].mxu0 %v38
    %v803 = vpop.f32.mrb[0].mxu0
    %v804 = vadd.f32 0.0, %v803
    %v805 = vpop.f32.mrb[0].mxu0
    %806 = vmatprep.mubr.f32.mxu0 0.0
    %807 = vmatmul.mubr.f32.gmra.mrb[0].mxu0 %v39
    %v808 = vpop.f32.mrb[0].mxu0
    %v809 = vadd.f32 0.0, %v808
    %v810 = vpop.f32.mrb[0].mxu0
    %811 = vmatprep.mubr.f32.mxu0 0.0
    %812 = vmatmul.mubr.f32.gmra.mrb[0].mxu0 %v40
    %v813 = vpop.f32.mrb[0].mxu0
    %v814 = vadd.f32 0.0, %v813
    %v815 = vpop.f32.mrb[0].mxu0
    %816 = vmatprep.mubr.f32.mxu0 0.0
    %817 = vmatmul.mubr.f32.gmra.mrb[0].mxu0 %v41
    %v818 = vpop.f32.mrb[0].mxu0
    %v819 = vadd.f32 0.0, %v818
    %v820 = vpop.f32.mrb[0].mxu0
    %821 = vmatprep.mubr.f32.mxu0 0.0
    %822 = vmatmul.mubr.f32.gmra.mrb[0].mxu0 %v42
    %v823 = vpop.f32.mrb[0].mxu0
    %v824 = vadd.f32 0.0, %v823
    %v825 = vpop.f32.mrb[0].mxu0
    %826 = vmatprep.mubr.f32.mxu0 0.0
    %827 = vmatmul.mubr.f32.gmra.mrb[0].mxu0 %v43
    %v828 = vpop.f32.mrb[0].mxu0
    %v829 = vadd.f32 0.0, %v828
    %v830 = vpop.f32.mrb[0].mxu0
    %831 = vmatprep.mubr.f32.mxu0 0.0
    %832 = vmatmul.mubr.f32.gmra.mrb[0].mxu0 %v44
    %v833 = vpop.f32.mrb[0].mxu0
    %v834 = vadd.f32 0.0, %v833
    %v835 = vpop.f32.mrb[0].mxu0
    %836 = vmatprep.mubr.f32.mxu0 0.0
    %837 = vmatmul.mubr.f32.gmra.mrb[0].mxu0 %v45
    %v838 = vpop.f32.mrb[0].mxu0
    %v839 = vadd.f32 0.0, %v838
    %v840 = vpop.f32.mrb[0].mxu0
    %841 = vmatprep.mubr.f32.mxu0 0.0
    %842 = vmatmul.mubr.f32.gmra.mrb[0].mxu0 %v46
    %v843 = vpop.f32.mrb[0].mxu0
    %v844 = vadd.f32 0.0, %v843
    %v845 = vpop.f32.mrb[0].mxu0
    %846 = vmatprep.mubr.f32.mxu0 0.0
    %847 = vmatmul.mubr.f32.gmra.mrb[0].mxu0 %v47
    %v848 = vpop.f32.mrb[0].mxu0
    %v849 = vadd.f32 0.0, %v848
    %v850 = vpop.f32.mrb[0].mxu0
    %851 = vmatprep.mubr.f32.mxu0 0.0
    %852 = vmatmul.mubr.f32.gmra.mrb[0].mxu0 %v48
    %v853 = vpop.f32.mrb[0].mxu0
    %v854 = vadd.f32 0.0, %v853
    %v855 = vpop.f32.mrb[0].mxu0
    %856 = vmatprep.mubr.f32.mxu0 0.0
    %857 = vmatmul.mubr.f32.gmra.mrb[0].mxu0 %v49
    %v858 = vpop.f32.mrb[0].mxu0
    %v859 = vadd.f32 0.0, %v858
    %v860 = vpop.f32.mrb[0].mxu0
    %861 = vdwg.mxu0
    %v862 = vmul.f32 %v784, %v82
    %v863 = vmul.f32 %v789, %v83
    %v864 = vmul.f32 %v794, %v84
    %v865 = vmul.f32 %v799, %v85
    %v866 = vmul.f32 %v804, %v86
    %v867 = vmul.f32 %v809, %v87
    %v868 = vmul.f32 %v814, %v88
    %v869 = vmul.f32 %v819, %v89
    %v870 = vmul.f32 %v824, %v90
    %v871 = vmul.f32 %v829, %v91
    %v872 = vmul.f32 %v834, %v92
    %v873 = vmul.f32 %v839, %v93
    %v874 = vmul.f32 %v844, %v94
    %v875 = vmul.f32 %v849, %v95
    %v876 = vmul.f32 %v854, %v96
    %v877 = vmul.f32 %v859, %v97
    %v878 = vmax.f32 %v862, 0.0
    %v879 = vmax.f32 %v863, 0.0
    %v880 = vmax.f32 %v864, 0.0
    %v881 = vmax.f32 %v865, 0.0
    %v882 = vmax.f32 %v866, 0.0
    %v883 = vmax.f32 %v867, 0.0
    %v884 = vmax.f32 %v868, 0.0
    %v885 = vmax.f32 %v869, 0.0
    %v886 = vmax.f32 %v870, 0.0
    %v887 = vmax.f32 %v871, 0.0
    %v888 = vmax.f32 %v872, 0.0
    %v889 = vmax.f32 %v873, 0.0
    %v890 = vmax.f32 %v874, 0.0
    %v891 = vmax.f32 %v875, 0.0
    %v892 = vmax.f32 %v876, 0.0
    %v893 = vmax.f32 %v877, 0.0
    %v894 = vld [vmem:[%s4] sm:$0xff]
    %v895 = vld [vmem:[%s4 + $0x8] sm:$0xff]
    %v896 = vld [vmem:[%s4 + $0x10] sm:$0xff]
    %v897 = vld [vmem:[%s4 + $0x18] sm:$0xff]
    %v899 = vsel %vm507, %v878, 0
    %v902 = vsel %vm507, %v879, 0
    %v905 = vsel %vm507, %v880, 0
    %v908 = vsel %vm507, %v881, 0
    %v911 = vsel %vm507, %v882, 0
    %v914 = vsel %vm507, %v883, 0
    %v917 = vsel %vm507, %v884, 0
    %v920 = vsel %vm507, %v885, 0
    %v923 = vsel %vm507, %v886, 0
    %v926 = vsel %vm507, %v887, 0
    %v929 = vsel %vm507, %v888, 0
    %v932 = vsel %vm507, %v889, 0
    %v935 = vsel %vm507, %v890, 0
    %v938 = vsel %vm507, %v891, 0
    %v941 = vsel %vm507, %v892, 0
    %v944 = vsel %vm507, %v893, 0
    %946 = vmatprep.subr.mxu0 0.0
    %947 = vmatpush1.msra.mxu0 %v894
    %948 = vmatprep.subr.mxu0 0.0
    %949 = vmatpush1.msra.mxu0 %v895
    %950 = vmatprep.subr.mxu0 0.0
    %951 = vmatpush1.msra.mxu0 %v896
    %952 = vmatprep.subr.mxu0 0.0
    %953 = vmatpush1.msra.mxu0 %v897
    %954 = vmatprep.subr.mxu0 0.0
    %955 = vmatpush1.msra.mxu0 0.0
    %956 = vmatprep.subr.mxu0 0.0
    %957 = vmatpush1.msra.mxu0 0.0
    %958 = vmatprep.subr.mxu0 0.0
    %959 = vmatpush1.msra.mxu0 0.0
    %960 = vmatprep.subr.mxu0 0.0
    %961 = vmatpush1.msra.mxu0 0.0
    %962 = vmatprep.subr.mxu0 0.0
    %963 = vmatpush1.msra.mxu0 0.0
    %964 = vmatprep.subr.mxu0 0.0
    %965 = vmatpush1.msra.mxu0 0.0
    %966 = vmatprep.subr.mxu0 0.0
    %967 = vmatpush1.msra.mxu0 0.0
    %968 = vmatprep.subr.mxu0 0.0
    %969 = vmatpush1.msra.mxu0 0.0
    %970 = vmatprep.subr.mxu0 0.0
    %971 = vmatpush1.msra.mxu0 0.0
    %972 = vmatprep.subr.mxu0 0.0
    %973 = vmatpush1.msra.mxu0 0.0
    %974 = vmatprep.subr.mxu0 0.0
    %975 = vmatpush1.msra.mxu0 0.0
    %976 = vmatprep.subr.mxu0 0.0
    %977 = vmatpush1.msra.mxu0 0.0
    %978 = vmatprep.subr.mxu0 0.0
    %979 = vmatpush1.msra.mxu0 0.0
    %980 = vmatprep.subr.mxu0 0.0
    %981 = vmatpush1.msra.mxu0 0.0
    %982 = vmatprep.subr.mxu0 0.0
    %983 = vmatpush1.msra.mxu0 0.0
    %984 = vmatprep.subr.mxu0 0.0
    %985 = vmatpush1.msra.mxu0 0.0
    %986 = vmatprep.subr.mxu0 0.0
    %987 = vmatpush1.msra.mxu0 0.0
    %988 = vmatprep.subr.mxu0 0.0
    %989 = vmatpush1.msra.mxu0 0.0
    %990 = vmatprep.subr.mxu0 0.0
    %991 = vmatpush1.msra.mxu0 0.0
    %992 = vmatprep.subr.mxu0 0.0
    %993 = vmatpush1.msra.mxu0 0.0
    %994 = vmatprep.subr.mxu0 0.0
    %995 = vmatpush1.msra.mxu0 0.0
    %996 = vmatprep.subr.mxu0 0.0
    %997 = vmatpush1.msra.mxu0 0.0
    %998 = vmatprep.subr.mxu0 0.0
    %999 = vmatpush1.msra.mxu0 0.0
    %1000 = vmatprep.subr.mxu0 0.0
    %1001 = vmatpush1.msra.mxu0 0.0
    %1002 = vmatprep.subr.mxu0 0.0
    %1003 = vmatpush1.msra.mxu0 0.0
    %1004 = vmatprep.subr.mxu0 0.0
    %1005 = vmatpush1.msra.mxu0 0.0
    %1006 = vmatprep.subr.mxu0 0.0
    %1007 = vmatpush1.msra.mxu0 0.0
    %1008 = vmatprep.subr.mxu0 0.0
    %1009 = vmatpush1.msra.mxu0 0.0
    %1010 = vmatprep.mubr.f32.mxu0 0.0
    %1011 = vmatmul.mubr.f32.gmra.mrb[0].mxu0 %v899
    %v1012 = vpop.f32.mrb[0].mxu0
    %v1013 = vadd.f32 0.0, %v1012
    %v1014 = vpop.f32.mrb[0].mxu0
    %1015 = vmatprep.mubr.f32.mxu0 0.0
    %1016 = vmatmul.mubr.f32.gmra.mrb[0].mxu0 %v902
    %v1017 = vpop.f32.mrb[0].mxu0
    %v1018 = vadd.f32 0.0, %v1017
    %v1019 = vpop.f32.mrb[0].mxu0
    %1020 = vmatprep.mubr.f32.mxu0 0.0
    %1021 = vmatmul.mubr.f32.gmra.mrb[0].mxu0 %v905
    %v1022 = vpop.f32.mrb[0].mxu0
    %v1023 = vadd.f32 0.0, %v1022
    %v1024 = vpop.f32.mrb[0].mxu0
    %1025 = vmatprep.mubr.f32.mxu0 0.0
    %1026 = vmatmul.mubr.f32.gmra.mrb[0].mxu0 %v908
    %v1027 = vpop.f32.mrb[0].mxu0
    %v1028 = vadd.f32 0.0, %v1027
    %v1029 = vpop.f32.mrb[0].mxu0
    %1030 = vmatprep.mubr.f32.mxu0 0.0
    %1031 = vmatmul.mubr.f32.gmra.mrb[0].mxu0 %v911
    %v1032 = vpop.f32.mrb[0].mxu0
    %v1033 = vadd.f32 0.0, %v1032
    %v1034 = vpop.f32.mrb[0].mxu0
    %1035 = vmatprep.mubr.f32.mxu0 0.0
    %1036 = vmatmul.mubr.f32.gmra.mrb[0].mxu0 %v914
    %v1037 = vpop.f32.mrb[0].mxu0
    %v1038 = vadd.f32 0.0, %v1037
    %v1039 = vpop.f32.mrb[0].mxu0
    %1040 = vmatprep.mubr.f32.mxu0 0.0
    %1041 = vmatmul.mubr.f32.gmra.mrb[0].mxu0 %v917
    %v1042 = vpop.f32.mrb[0].mxu0
    %v1043 = vadd.f32 0.0, %v1042
    %v1044 = vpop.f32.mrb[0].mxu0
    %1045 = vmatprep.mubr.f32.mxu0 0.0
    %1046 = vmatmul.mubr.f32.gmra.mrb[0].mxu0 %v920
    %v1047 = vpop.f32.mrb[0].mxu0
    %v1048 = vadd.f32 0.0, %v1047
    %v1049 = vpop.f32.mrb[0].mxu0
    %1050 = vmatprep.mubr.f32.mxu0 0.0
    %1051 = vmatmul.mubr.f32.gmra.mrb[0].mxu0 %v923
    %v1052 = vpop.f32.mrb[0].mxu0
    %v1053 = vadd.f32 0.0, %v1052
    %v1054 = vpop.f32.mrb[0].mxu0
    %1055 = vmatprep.mubr.f32.mxu0 0.0
    %1056 = vmatmul.mubr.f32.gmra.mrb[0].mxu0 %v926
    %v1057 = vpop.f32.mrb[0].mxu0
    %v1058 = vadd.f32 0.0, %v1057
    %v1059 = vpop.f32.mrb[0].mxu0
    %1060 = vmatprep.mubr.f32.mxu0 0.0
    %1061 = vmatmul.mubr.f32.gmra.mrb[0].mxu0 %v929
    %v1062 = vpop.f32.mrb[0].mxu0
    %v1063 = vadd.f32 0.0, %v1062
    %v1064 = vpop.f32.mrb[0].mxu0
    %1065 = vmatprep.mubr.f32.mxu0 0.0
    %1066 = vmatmul.mubr.f32.gmra.mrb[0].mxu0 %v932
    %v1067 = vpop.f32.mrb[0].mxu0
    %v1068 = vadd.f32 0.0, %v1067
    %v1069 = vpop.f32.mrb[0].mxu0
    %1070 = vmatprep.mubr.f32.mxu0 0.0
    %1071 = vmatmul.mubr.f32.gmra.mrb[0].mxu0 %v935
    %v1072 = vpop.f32.mrb[0].mxu0
    %v1073 = vadd.f32 0.0, %v1072
    %v1074 = vpop.f32.mrb[0].mxu0
    %1075 = vmatprep.mubr.f32.mxu0 0.0
    %1076 = vmatmul.mubr.f32.gmra.mrb[0].mxu0 %v938
    %v1077 = vpop.f32.mrb[0].mxu0
    %v1078 = vadd.f32 0.0, %v1077
    %v1079 = vpop.f32.mrb[0].mxu0
    %1080 = vmatprep.mubr.f32.mxu0 0.0
    %1081 = vmatmul.mubr.f32.gmra.mrb[0].mxu0 %v941
    %v1082 = vpop.f32.mrb[0].mxu0
    %v1083 = vadd.f32 0.0, %v1082
    %v1084 = vpop.f32.mrb[0].mxu0
    %1085 = vmatprep.mubr.f32.mxu0 0.0
    %1086 = vmatmul.mubr.f32.gmra.mrb[0].mxu0 %v944
    %v1087 = vpop.f32.mrb[0].mxu0
    %v1088 = vadd.f32 0.0, %v1087
    %v1089 = vpop.f32.mrb[0].mxu0
    %1090 = vdwg.mxu0
    %v1091 = vmul.f32 %v1013, %v82
    %v1092 = vmul.f32 %v1018, %v83
    %v1093 = vmul.f32 %v1023, %v84
    %v1094 = vmul.f32 %v1028, %v85
    %v1095 = vmul.f32 %v1033, %v86
    %v1096 = vmul.f32 %v1038, %v87
    %v1097 = vmul.f32 %v1043, %v88
    %v1098 = vmul.f32 %v1048, %v89
    %v1099 = vmul.f32 %v1053, %v90
    %v1100 = vmul.f32 %v1058, %v91
    %v1101 = vmul.f32 %v1063, %v92
    %v1102 = vmul.f32 %v1068, %v93
    %v1103 = vmul.f32 %v1073, %v94
    %v1104 = vmul.f32 %v1078, %v95
    %v1105 = vmul.f32 %v1083, %v96
    %v1106 = vmul.f32 %v1088, %v97
    %1107 = vmatprep.subr.mxu0 0.0
    %1108 = vmatpush1.msra.mxu0 %v1091
    %1109 = vmatprep.subr.mxu0 0.0
    %1110 = vmatpush1.msra.mxu0 %v1092
    %1111 = vmatprep.subr.mxu0 0.0
    %1112 = vmatpush1.msra.mxu0 %v1093
    %1113 = vmatprep.subr.mxu0 0.0
    %1114 = vmatpush1.msra.mxu0 %v1094
    %1115 = vmatprep.subr.mxu0 0.0
    %1116 = vmatpush1.msra.mxu0 %v1095
    %1117 = vmatprep.subr.mxu0 0.0
    %1118 = vmatpush1.msra.mxu0 %v1096
    %1119 = vmatprep.subr.mxu0 0.0
    %1120 = vmatpush1.msra.mxu0 %v1097
    %1121 = vmatprep.subr.mxu0 0.0
    %1122 = vmatpush1.msra.mxu0 %v1098
    %1123 = vmatprep.subr.mxu0 0.0
    %1124 = vmatpush1.msra.mxu0 %v1099
    %1125 = vmatprep.subr.mxu0 0.0
    %1126 = vmatpush1.msra.mxu0 %v1100
    %1127 = vmatprep.subr.mxu0 0.0
    %1128 = vmatpush1.msra.mxu0 %v1101
    %1129 = vmatprep.subr.mxu0 0.0
    %1130 = vmatpush1.msra.mxu0 %v1102
    %1131 = vmatprep.subr.mxu0 0.0
    %1132 = vmatpush1.msra.mxu0 %v1103
    %1133 = vmatprep.subr.mxu0 0.0
    %1134 = vmatpush1.msra.mxu0 %v1104
    %1135 = vmatprep.subr.mxu0 0.0
    %1136 = vmatpush1.msra.mxu0 %v1105
    %1137 = vmatprep.subr.mxu0 0.0
    %1138 = vmatpush1.msra.mxu0 %v1106
    %1139 = vmatprep.subr.mxu0 0.0
    %1140 = vmatpush1.msra.mxu0 0.0
    %1141 = vmatprep.subr.mxu0 0.0
    %1142 = vmatpush1.msra.mxu0 0.0
    %1143 = vmatprep.subr.mxu0 0.0
    %1144 = vmatpush1.msra.mxu0 0.0
    %1145 = vmatprep.subr.mxu0 0.0
    %1146 = vmatpush1.msra.mxu0 0.0
    %1147 = vmatprep.subr.mxu0 0.0
    %1148 = vmatpush1.msra.mxu0 0.0
    %1149 = vmatprep.subr.mxu0 0.0
    %1150 = vmatpush1.msra.mxu0 0.0
    %1151 = vmatprep.subr.mxu0 0.0
    %1152 = vmatpush1.msra.mxu0 0.0
    %1153 = vmatprep.subr.mxu0 0.0
    %1154 = vmatpush1.msra.mxu0 0.0
    %1155 = vmatprep.subr.mxu0 0.0
    %1156 = vmatpush1.msra.mxu0 0.0
    %1157 = vmatprep.subr.mxu0 0.0
    %1158 = vmatpush1.msra.mxu0 0.0
    %1159 = vmatprep.subr.mxu0 0.0
    %1160 = vmatpush1.msra.mxu0 0.0
    %1161 = vmatprep.subr.mxu0 0.0
    %1162 = vmatpush1.msra.mxu0 0.0
    %1163 = vmatprep.subr.mxu0 0.0
    %1164 = vmatpush1.msra.mxu0 0.0
    %1165 = vmatprep.subr.mxu0 0.0
    %1166 = vmatpush1.msra.mxu0 0.0
    %1167 = vmatprep.subr.mxu0 0.0
    %1168 = vmatpush1.msra.mxu0 0.0
    %1169 = vmatprep.subr.mxu0 0.0
    %1170 = vmatpush1.msra.mxu0 0.0
    %1171 = vmatprep.mubr.f32.mxu0 0.0
    %1172 = vmatmul.mubr.f32.gmra.mrb[0].mxu0 %v34
    %v1173 = vpop.f32.mrb[0].mxu0
    %v1174 = vadd.f32 0.0, %v1173
    %v1175 = vpop.f32.mrb[0].mxu0
    %1176 = vmatprep.mubr.f32.mxu0 0.0
    %1177 = vmatmul.mubr.f32.gmra.mrb[0].mxu0 %v35
    %v1178 = vpop.f32.mrb[0].mxu0
    %v1179 = vadd.f32 0.0, %v1178
    %v1180 = vpop.f32.mrb[0].mxu0
    %1181 = vmatprep.mubr.f32.mxu0 0.0
    %1182 = vmatmul.mubr.f32.gmra.mrb[0].mxu0 %v36
    %v1183 = vpop.f32.mrb[0].mxu0
    %v1184 = vadd.f32 0.0, %v1183
    %v1185 = vpop.f32.mrb[0].mxu0
    %1186 = vmatprep.mubr.f32.mxu0 0.0
    %1187 = vmatmul.mubr.f32.gmra.mrb[0].mxu0 %v37
    %v1188 = vpop.f32.mrb[0].mxu0
    %v1189 = vadd.f32 0.0, %v1188
    %v1190 = vpop.f32.mrb[0].mxu0
    %1191 = vmatprep.mubr.f32.mxu0 0.0
    %1192 = vmatmul.mubr.f32.gmra.mrb[0].mxu0 %v38
    %v1193 = vpop.f32.mrb[0].mxu0
    %v1194 = vadd.f32 0.0, %v1193
    %v1195 = vpop.f32.mrb[0].mxu0
    %1196 = vmatprep.mubr.f32.mxu0 0.0
    %1197 = vmatmul.mubr.f32.gmra.mrb[0].mxu0 %v39
    %v1198 = vpop.f32.mrb[0].mxu0
    %v1199 = vadd.f32 0.0, %v1198
    %v1200 = vpop.f32.mrb[0].mxu0
    %1201 = vmatprep.mubr.f32.mxu0 0.0
    %1202 = vmatmul.mubr.f32.gmra.mrb[0].mxu0 %v40
    %v1203 = vpop.f32.mrb[0].mxu0
    %v1204 = vadd.f32 0.0, %v1203
    %v1205 = vpop.f32.mrb[0].mxu0
    %1206 = vmatprep.mubr.f32.mxu0 0.0
    %1207 = vmatmul.mubr.f32.gmra.mrb[0].mxu0 %v41
    %v1208 = vpop.f32.mrb[0].mxu0
    %v1209 = vadd.f32 0.0, %v1208
    %v1210 = vpop.f32.mrb[0].mxu0
    %1211 = vmatprep.mubr.f32.mxu0 0.0
    %1212 = vmatmul.mubr.f32.gmra.mrb[0].mxu0 %v42
    %v1213 = vpop.f32.mrb[0].mxu0
    %v1214 = vadd.f32 0.0, %v1213
    %v1215 = vpop.f32.mrb[0].mxu0
    %1216 = vmatprep.mubr.f32.mxu0 0.0
    %1217 = vmatmul.mubr.f32.gmra.mrb[0].mxu0 %v43
    %v1218 = vpop.f32.mrb[0].mxu0
    %v1219 = vadd.f32 0.0, %v1218
    %v1220 = vpop.f32.mrb[0].mxu0
    %1221 = vmatprep.mubr.f32.mxu0 0.0
    %1222 = vmatmul.mubr.f32.gmra.mrb[0].mxu0 %v44
    %v1223 = vpop.f32.mrb[0].mxu0
    %v1224 = vadd.f32 0.0, %v1223
    %v1225 = vpop.f32.mrb[0].mxu0
    %1226 = vmatprep.mubr.f32.mxu0 0.0
    %1227 = vmatmul.mubr.f32.gmra.mrb[0].mxu0 %v45
    %v1228 = vpop.f32.mrb[0].mxu0
    %v1229 = vadd.f32 0.0, %v1228
    %v1230 = vpop.f32.mrb[0].mxu0
    %1231 = vmatprep.mubr.f32.mxu0 0.0
    %1232 = vmatmul.mubr.f32.gmra.mrb[0].mxu0 %v46
    %v1233 = vpop.f32.mrb[0].mxu0
    %v1234 = vadd.f32 0.0, %v1233
    %v1235 = vpop.f32.mrb[0].mxu0
    %1236 = vmatprep.mubr.f32.mxu0 0.0
    %1237 = vmatmul.mubr.f32.gmra.mrb[0].mxu0 %v47
    %v1238 = vpop.f32.mrb[0].mxu0
    %v1239 = vadd.f32 0.0, %v1238
    %v1240 = vpop.f32.mrb[0].mxu0
    %1241 = vmatprep.mubr.f32.mxu0 0.0
    %1242 = vmatmul.mubr.f32.gmra.mrb[0].mxu0 %v48
    %v1243 = vpop.f32.mrb[0].mxu0
    %v1244 = vadd.f32 0.0, %v1243
    %v1245 = vpop.f32.mrb[0].mxu0
    %1246 = vmatprep.mubr.f32.mxu0 0.0
    %1247 = vmatmul.mubr.f32.gmra.mrb[0].mxu0 %v49
    %v1248 = vpop.f32.mrb[0].mxu0
    %v1249 = vadd.f32 0.0, %v1248
    %v1250 = vpop.f32.mrb[0].mxu0
    %1251 = vdwg.mxu0
    %v1252 = vmul.f32 %v1174, %v82
    %v1253 = vmul.f32 %v1179, %v83
    %v1254 = vmul.f32 %v1184, %v84
    %v1255 = vmul.f32 %v1189, %v85
    %v1256 = vmul.f32 %v1194, %v86
    %v1257 = vmul.f32 %v1199, %v87
    %v1258 = vmul.f32 %v1204, %v88
    %v1259 = vmul.f32 %v1209, %v89
    %v1260 = vmul.f32 %v1214, %v90
    %v1261 = vmul.f32 %v1219, %v91
    %v1262 = vmul.f32 %v1224, %v92
    %v1263 = vmul.f32 %v1229, %v93
    %v1264 = vmul.f32 %v1234, %v94
    %v1265 = vmul.f32 %v1239, %v95
    %v1266 = vmul.f32 %v1244, %v96
    %v1267 = vmul.f32 %v1249, %v97
    %1268 = vst.msk [vmem:[%s5] sm:$0xff] %vm507, %v1252
    %1269 = vst.msk [vmem:[%s5 + $0x8] sm:$0xff] %vm507, %v1253
    %1270 = vst.msk [vmem:[%s5 + $0x10] sm:$0xff] %vm507, %v1254
    %1271 = vst.msk [vmem:[%s5 + $0x18] sm:$0xff] %vm507, %v1255
    %1272 = vst.msk [vmem:[%s5 + $0x20] sm:$0xff] %vm507, %v1256
    %1273 = vst.msk [vmem:[%s5 + $0x28] sm:$0xff] %vm507, %v1257
    %1274 = vst.msk [vmem:[%s5 + $0x30] sm:$0xff] %vm507, %v1258
    %1275 = vst.msk [vmem:[%s5 + $0x38] sm:$0xff] %vm507, %v1259
    %1276 = vst.msk [vmem:[%s5 + $0x40] sm:$0xff] %vm507, %v1260
    %1277 = vst.msk [vmem:[%s5 + $0x48] sm:$0xff] %vm507, %v1261
    %1278 = vst.msk [vmem:[%s5 + $0x50] sm:$0xff] %vm507, %v1262
    %1279 = vst.msk [vmem:[%s5 + $0x58] sm:$0xff] %vm507, %v1263
    %1280 = vst.msk [vmem:[%s5 + $0x60] sm:$0xff] %vm507, %v1264
    %1281 = vst.msk [vmem:[%s5 + $0x68] sm:$0xff] %vm507, %v1265
    %1282 = vst.msk [vmem:[%s5 + $0x70] sm:$0xff] %vm507, %v1266
    %1283 = vst.msk [vmem:[%s5 + $0x78] sm:$0xff] %vm507, %v1267
    // Predicated region
    $region26: #{gcn_forward.1} parent=1 // pred_check
      _
    $region27: #{gcn_forward.1} parent=1 // pred_check_branch
      %1285 = sbr.rel (0) target = $region29
    $region28: #{gcn_forward.1} parent=1 // pred_region
      _
    $region29: #{gcn_forward.1} parent=1 // pred_fallthru
      _
    // Predicated region
    $region30: #{gcn_forward.1} parent=1 // pred_check
      _
    $region31: #{gcn_forward.1} parent=1 // pred_check_branch
      %1287 = sbr.rel (0) target = $region33
    $region32: #{gcn_forward.1} parent=1 // pred_region
      _
    $region33: #{gcn_forward.1} parent=1 // pred_fallthru
      _
    %1288 = vsyncpa [#allocation3], 1

</llo_original>
